<compile_context>
chip_gen: v7x
topology: tpu7x:2x2x1
jax: 0.10.0
libtpu: 0.0.40
codegen_flags: <defaults>
</compile_context>

<pallas_src>
import functools
import math

import jax
import jax.numpy as jnp
from jax.experimental import pallas as pl
from jax.experimental.pallas import tpu as pltpu

_LANE = 128            # lane-dense fused feature / output-slab width
_TB = 512              # batch tile for the gridded (large-batch) path
_GRID_MIN_BATCH = 1024  # below this, run gridless (full-array VMEM blocks)


# ---------------------------------------------------------------------------
# Kernel: fused 3-layer (actor||critic) MLP + fused heads.
#   x_ref      (B, D)      f32
#   w1_ref     (D, NW)     bf16   fused layer-1 weight [actor | critic | pad]
#   wstack_ref (3, NW, NW) bf16   [layer2 blockdiag, layer3 blockdiag, heads]
#   bstack_ref (4, NW)     f32    [b1, b2, b3, b_heads(+logp const)]
#   out_ref    (B, NW)     f32    [action mean | value | logp | zero pad]
# ---------------------------------------------------------------------------
def _policy_act_kernel(x_ref, w1_ref, wstack_ref, bstack_ref, out_ref):
    f32, bf16 = jnp.float32, jnp.bfloat16
    x = x_ref[...].astype(bf16)
    h = jnp.tanh(jnp.dot(x, w1_ref[...], preferred_element_type=f32)
                 + bstack_ref[0:1, :])
    h = jnp.tanh(jnp.dot(h.astype(bf16), wstack_ref[0],
                         preferred_element_type=f32) + bstack_ref[1:2, :])
    h = jnp.tanh(jnp.dot(h.astype(bf16), wstack_ref[1],
                         preferred_element_type=f32) + bstack_ref[2:3, :])
    out_ref[...] = (jnp.dot(h.astype(bf16), wstack_ref[2],
                            preferred_element_type=f32) + bstack_ref[3:4, :])


# ---------------------------------------------------------------------------
# Parameter packing (done ONCE at setup; not part of the per-call hot path)
# ---------------------------------------------------------------------------
def pack_policy_params(params, num_actions, init_log_std):
    """Pack per-tower MLPBase / DiagGaussian weights into fused bf16 operands."""
    D, H = params["aw1"].shape
    A = num_actions
    f32 = jnp.float32
    NW = max(2 * H, _LANE)
    NW = ((NW + _LANE - 1) // _LANE) * _LANE  # fused width, multiple of 128
    assert A + 2 <= NW

    # layer 1: one matmul produces [h_actor | h_critic | 0-pad]
    w1 = jnp.zeros((D, NW), f32)
    w1 = w1.at[:, :H].set(params["aw1"]).at[:, H:2 * H].set(params["cw1"])
    b1 = (jnp.zeros((NW,), f32)
          .at[:H].set(params["ab1"][0]).at[H:2 * H].set(params["cb1"][0]))

    def blockdiag(a, c):
        w = jnp.zeros((NW, NW), f32)
        return w.at[:H, :H].set(a).at[H:2 * H, H:2 * H].set(c)

    w2 = blockdiag(params["aw2"], params["cw2"])
    b2 = (jnp.zeros((NW,), f32)
          .at[:H].set(params["ab2"][0]).at[H:2 * H].set(params["cb2"][0]))
    w3 = blockdiag(params["aw3"], params["cw3"])
    b3 = (jnp.zeros((NW,), f32)
          .at[:H].set(params["ab3"][0]).at[H:2 * H].set(params["cb3"][0]))

    # fused heads:
    #   cols [0, A) : DiagGaussian mean (reads actor half, rows [0, H))
    #   col  A      : critic_linear value (reads critic half, rows [H, 2H))
    #   col  A+1    : zero weight; bias carries the constant log-prob of the
    #                 deterministic action (== mean)
    wh = jnp.zeros((NW, NW), f32)
    wh = wh.at[:H, :A].set(params["mw"]).at[H:2 * H, A].set(params["vw"][:, 0])

    logp_const = -A * init_log_std - 0.5 * A * math.log(2.0 * math.pi)
    bh = (jnp.zeros((NW,), f32)
          .at[:A].set(params["mb"][0])
          .at[A].set(params["vb"][0, 0])
          .at[A + 1].set(logp_const))

    return {
        "w1": w1.astype(jnp.bfloat16),                            # (D, NW)
        "wstack": jnp.stack([w2, w3, wh]).astype(jnp.bfloat16),   # (3, NW, NW)
        "bstack": jnp.stack([b1, b2, b3, bh]),                    # (4, NW) f32
    }


# ---------------------------------------------------------------------------
# Wrapper: Policy.act(deterministic=True)  — fully jitted
# ---------------------------------------------------------------------------
@functools.partial(jax.jit, static_argnames=("num_actions",))
def policy_act_pallas(inputs, rnn_hxs, masks, packed, *, num_actions):
    """Mirrors Policy.act(): returns (value, action, action_log_probs, rnn_hxs)."""
    del masks  # only used by the recurrent path (not implemented)
    A = num_actions
    B0, D = inputs.shape
    w1, wstack, bstack = packed["w1"], packed["wstack"], packed["bstack"]
    NW = wstack.shape[-1]
    vmem = pltpu.MemorySpace.VMEM

    def cost(batch_rows):
        flops = 2 * batch_rows * (D * NW + 3 * NW * NW)
        transcendentals = 3 * batch_rows * NW
        bytes_accessed = (B0 * D * 4 + int(w1.size) * 2 + int(wstack.size) * 2
                          + int(bstack.size) * 4 + batch_rows * NW * 4)
        return pl.CostEstimate(flops=flops, transcendentals=transcendentals,
                               bytes_accessed=bytes_accessed)

    if B0 < _GRID_MIN_BATCH:
        # Gridless: full-array VMEM blocks. The (8,128) divisibility rule does
        # not apply (block == full array), so no batch padding is needed.
        slab = pl.pallas_call(
            _policy_act_kernel,
            out_shape=jax.ShapeDtypeStruct((B0, NW), jnp.float32),
            in_specs=[pl.BlockSpec(memory_space=vmem)] * 4,
            out_specs=pl.BlockSpec(memory_space=vmem),
            cost_estimate=cost(B0),
        )(inputs, w1, wstack, bstack)
    else:
        # Batch-tiled grid: weights stay resident (constant index_map), x/out
        # blocks are double-buffered; "parallel" lets v7x shard batch tiles
        # across its two TensorCores.
        pad = (-B0) % _TB
        x = jnp.pad(inputs, ((0, pad), (0, 0))) if pad else inputs
        B = x.shape[0]
        slab = pl.pallas_call(
            _policy_act_kernel,
            out_shape=jax.ShapeDtypeStruct((B, NW), jnp.float32),
            grid=(B // _TB,),
            in_specs=[
                pl.BlockSpec((_TB, D), lambda i: (i, 0)),
                pl.BlockSpec((D, NW), lambda i: (0, 0)),
                pl.BlockSpec((3, NW, NW), lambda i: (0, 0, 0)),
                pl.BlockSpec((4, NW), lambda i: (0, 0)),
            ],
            out_specs=pl.BlockSpec((_TB, NW), lambda i: (i, 0)),
            compiler_params=pltpu.CompilerParams(
                dimension_semantics=("parallel",)),
            cost_estimate=cost(B),
        )(x, w1, wstack, bstack)
        if pad:
            slab = slab[:B0]

    action = slab[:, :A]                      # DiagGaussian mean == dist.mode()
    value = slab[:, A:A + 1]                  # critic_linear(critic(x))
    action_log_probs = slab[:, A + 1:A + 2]   # constant for deterministic action
    return value, action, action_log_probs, rnn_hxs


# ---------------------------------------------------------------------------
# Synthetic parameters + plain-JAX reference (for verification)
# ---------------------------------------------------------------------------
def _init_params(key, num_inputs, hidden_size, num_actions):
    """Deterministic synthetic parameters (shapes from MLPBase / DiagGaussian)."""
    keys = jax.random.split(key, 16)
    k = iter(keys)

    def lin(kk, fan_in, fan_out, scale=None):
        if scale is None:
            scale = 1.0 / math.sqrt(fan_in)
        w = scale * jax.random.normal(kk, (fan_in, fan_out), dtype=jnp.float32)
        b = 0.01 * jax.random.normal(kk, (1, fan_out), dtype=jnp.float32)
        return w, b

    p = {}
    p["aw1"], p["ab1"] = lin(next(k), num_inputs, hidden_size)
    p["aw2"], p["ab2"] = lin(next(k), hidden_size, hidden_size)
    p["aw3"], p["ab3"] = lin(next(k), hidden_size, hidden_size)
    p["cw1"], p["cb1"] = lin(next(k), num_inputs, hidden_size)
    p["cw2"], p["cb2"] = lin(next(k), hidden_size, hidden_size)
    p["cw3"], p["cb3"] = lin(next(k), hidden_size, hidden_size)
    p["vw"], p["vb"] = lin(next(k), hidden_size, 1)
    p["mw"], p["mb"] = lin(next(k), hidden_size, num_actions)
    return p


def _reference_act(x, params, num_actions, init_log_std):
    """Plain-JAX (f32) reference of Policy.act(deterministic=True)."""
    def mlp(h, w1, b1, w2, b2, w3, b3):
        h = jnp.tanh(h @ w1 + b1)
        h = jnp.tanh(h @ w2 + b2)
        return jnp.tanh(h @ w3 + b3)

    ha = mlp(x, params["aw1"], params["ab1"], params["aw2"], params["ab2"],
             params["aw3"], params["ab3"])
    hc = mlp(x, params["cw1"], params["cb1"], params["cw2"], params["cb2"],
             params["cw3"], params["cb3"])
    value = hc @ params["vw"] + params["vb"]
    mean = ha @ params["mw"] + params["mb"]

    logstd = jnp.full((num_actions,), init_log_std, dtype=jnp.float32)
    action = mean  # deterministic -> dist.mode()
    var = jnp.exp(2.0 * logstd)
    log_prob = (-((action - mean) ** 2) / (2.0 * var)
                - logstd - 0.5 * math.log(2.0 * math.pi))
    action_log_probs = jnp.sum(log_prob, axis=-1, keepdims=True)
    return value, action, action_log_probs


# ---------------------------------------------------------------------------
# Main
# ---------------------------------------------------------------------------
if __name__ == "__main__":
    # Shapes implied by Policy + MLPBase: obs_shape=(num_inputs,),
    # Box action space with num_actions dims, hidden_size via base_kwargs.
    batch = 8
    num_inputs = 32
    hidden_size = 64
    num_actions = 8
    init_log_std = -0.5

    key = jax.random.PRNGKey(0)
    k_param, k_x, k_xl = jax.random.split(key, 3)

    params = _init_params(k_param, num_inputs, hidden_size, num_actions)
    packed = pack_policy_params(params, num_actions, init_log_std)

    # matmul operands are bf16 -> loosened tolerance (accumulation stays f32)
    TOL = dict(atol=5e-2, rtol=5e-2)

    # ---- small batch: gridless, full-array VMEM path --------------------
    inputs = jax.random.normal(k_x, (batch, num_inputs), dtype=jnp.float32)
    rnn_hxs = jnp.zeros((batch, 1), dtype=jnp.float32)   # non-recurrent -> size 1
    masks = jnp.ones((batch, 1), dtype=jnp.float32)

    value, action, action_log_probs, rnn_hxs_out = policy_act_pallas(
        inputs, rnn_hxs, masks, packed, num_actions=num_actions)
    jax.block_until_ready((value, action, action_log_probs, rnn_hxs_out))

    v_ref, a_ref, lp_ref = _reference_act(inputs, params, num_actions, init_log_std)
    assert value.shape == (batch, 1)
    assert action.shape == (batch, num_actions)
    assert action_log_probs.shape == (batch, 1)
    assert rnn_hxs_out.shape == (batch, 1)
    assert jnp.allclose(value, v_ref, **TOL)
    assert jnp.allclose(action, a_ref, **TOL)
    assert jnp.allclose(action_log_probs, lp_ref, **TOL)

    # ---- large batch: batch-tiled grid path (parallel over TensorCores) --
    big_batch = 1024
    inputs_l = jax.random.normal(k_xl, (big_batch, num_inputs), dtype=jnp.float32)
    rnn_hxs_l = jnp.zeros((big_batch, 1), dtype=jnp.float32)
    masks_l = jnp.ones((big_batch, 1), dtype=jnp.float32)

    value_l, action_l, logp_l, _ = policy_act_pallas(
        inputs_l, rnn_hxs_l, masks_l, packed, num_actions=num_actions)
    jax.block_until_ready((value_l, action_l, logp_l))

    v_ref_l, a_ref_l, lp_ref_l = _reference_act(
        inputs_l, params, num_actions, init_log_std)
    assert value_l.shape == (big_batch, 1)
    assert action_l.shape == (big_batch, num_actions)
    assert jnp.allclose(value_l, v_ref_l, **TOL)
    assert jnp.allclose(action_l, a_ref_l, **TOL)
    assert jnp.allclose(logp_l, lp_ref_l, **TOL)

    print("KERNEL_OK")
</pallas_src>

<mosaic_0001>
module attributes {stable_mosaic.version = 11 : i64} {
  func.func @_policy_act_kernel(%arg0: memref<8x32xf32, #tpu.memory_space<vmem>>, %arg1: memref<32x128xbf16, #tpu.memory_space<vmem>>, %arg2: memref<3x128x128xbf16, #tpu.memory_space<vmem>>, %arg3: memref<4x128xf32, #tpu.memory_space<vmem>>, %arg4: memref<8x128xf32, #tpu.memory_space<vmem>>) attributes {dimension_semantics = [], scalar_prefetch = 0 : i64, scratch_operands = 0 : i64, tpu.core_type = #tpu.core_type<tc>} {
    %c0 = arith.constant 0 : index
    %c0_0 = arith.constant 0 : index
    %0 = vector.load %arg0[%c0, %c0_0] : memref<8x32xf32, #tpu.memory_space<vmem>>, vector<8x32xf32>
    %1 = arith.truncf %0 : vector<8x32xf32> to vector<8x32xbf16>
    %c0_1 = arith.constant 0 : index
    %c0_2 = arith.constant 0 : index
    %2 = vector.load %arg1[%c0_1, %c0_2] : memref<32x128xbf16, #tpu.memory_space<vmem>>, vector<32x128xbf16>
    %cst = arith.constant dense<0.000000e+00> : vector<8x128xf32>
    %3 = tpu.matmul %1, %2, %cst {dimension_numbers = #tpu.dot_dimension_numbers<[1], [0], [0], [1], [0, 0, 1, 1], [], []>} : vector<8x32xbf16>, vector<32x128xbf16>, vector<8x128xf32> -> vector<8x128xf32>
    %c0_3 = arith.constant 0 : index
    %c0_4 = arith.constant 0 : index
    %4 = vector.load %arg3[%c0_3, %c0_4] : memref<4x128xf32, #tpu.memory_space<vmem>>, vector<1x128xf32>
    %5 = vector.broadcast %4 : vector<1x128xf32> to vector<8x128xf32>
    %6 = arith.addf %3, %5 : vector<8x128xf32>
    %7 = math.tanh %6 : vector<8x128xf32>
    %8 = arith.truncf %7 : vector<8x128xf32> to vector<8x128xbf16>
    %c0_5 = arith.constant 0 : index
    %c0_6 = arith.constant 0 : index
    %c0_7 = arith.constant 0 : index
    %9 = vector.load %arg2[%c0_5, %c0_6, %c0_7] : memref<3x128x128xbf16, #tpu.memory_space<vmem>>, vector<1x128x128xbf16>
    %10 = vector.shape_cast %9 : vector<1x128x128xbf16> to vector<128x128xbf16>
    %cst_8 = arith.constant dense<0.000000e+00> : vector<8x128xf32>
    %11 = tpu.matmul %8, %10, %cst_8 {dimension_numbers = #tpu.dot_dimension_numbers<[1], [0], [0], [1], [0, 0, 1, 1], [], []>} : vector<8x128xbf16>, vector<128x128xbf16>, vector<8x128xf32> -> vector<8x128xf32>
    %c1 = arith.constant 1 : index
    %c0_9 = arith.constant 0 : index
    %12 = vector.load %arg3[%c1, %c0_9] : memref<4x128xf32, #tpu.memory_space<vmem>>, vector<1x128xf32>
    %13 = vector.broadcast %12 : vector<1x128xf32> to vector<8x128xf32>
    %14 = arith.addf %11, %13 : vector<8x128xf32>
    %15 = math.tanh %14 : vector<8x128xf32>
    %16 = arith.truncf %15 : vector<8x128xf32> to vector<8x128xbf16>
    %c1_10 = arith.constant 1 : index
    %c0_11 = arith.constant 0 : index
    %c0_12 = arith.constant 0 : index
    %17 = vector.load %arg2[%c1_10, %c0_11, %c0_12] : memref<3x128x128xbf16, #tpu.memory_space<vmem>>, vector<1x128x128xbf16>
    %18 = vector.shape_cast %17 : vector<1x128x128xbf16> to vector<128x128xbf16>
    %cst_13 = arith.constant dense<0.000000e+00> : vector<8x128xf32>
    %19 = tpu.matmul %16, %18, %cst_13 {dimension_numbers = #tpu.dot_dimension_numbers<[1], [0], [0], [1], [0, 0, 1, 1], [], []>} : vector<8x128xbf16>, vector<128x128xbf16>, vector<8x128xf32> -> vector<8x128xf32>
    %c2 = arith.constant 2 : index
    %c0_14 = arith.constant 0 : index
    %20 = vector.load %arg3[%c2, %c0_14] : memref<4x128xf32, #tpu.memory_space<vmem>>, vector<1x128xf32>
    %21 = vector.broadcast %20 : vector<1x128xf32> to vector<8x128xf32>
    %22 = arith.addf %19, %21 : vector<8x128xf32>
    %23 = math.tanh %22 : vector<8x128xf32>
    %24 = arith.truncf %23 : vector<8x128xf32> to vector<8x128xbf16>
    %c2_15 = arith.constant 2 : index
    %c0_16 = arith.constant 0 : index
    %c0_17 = arith.constant 0 : index
    %25 = vector.load %arg2[%c2_15, %c0_16, %c0_17] : memref<3x128x128xbf16, #tpu.memory_space<vmem>>, vector<1x128x128xbf16>
    %26 = vector.shape_cast %25 : vector<1x128x128xbf16> to vector<128x128xbf16>
    %cst_18 = arith.constant dense<0.000000e+00> : vector<8x128xf32>
    %27 = tpu.matmul %24, %26, %cst_18 {dimension_numbers = #tpu.dot_dimension_numbers<[1], [0], [0], [1], [0, 0, 1, 1], [], []>} : vector<8x128xbf16>, vector<128x128xbf16>, vector<8x128xf32> -> vector<8x128xf32>
    %c3 = arith.constant 3 : index
    %c0_19 = arith.constant 0 : index
    %28 = vector.load %arg3[%c3, %c0_19] : memref<4x128xf32, #tpu.memory_space<vmem>>, vector<1x128xf32>
    %29 = vector.broadcast %28 : vector<1x128xf32> to vector<8x128xf32>
    %30 = arith.addf %27, %29 : vector<8x128xf32>
    %c0_20 = arith.constant 0 : index
    %c0_21 = arith.constant 0 : index
    %31 = vector.load %arg4[%c0_20, %c0_21] : memref<8x128xf32, #tpu.memory_space<vmem>>, vector<8x128xf32>
    tpu.vector_store %arg4[%c0_20, %c0_21], %30 {strides = array<i32>} : memref<8x128xf32, #tpu.memory_space<vmem>>, vector<8x128xf32>,
    return
  }
}

</mosaic_0001>

<llo_original>
// kernel: policy_act_pallas.1
$region0: #{policy_act_pallas.1}
  #allocation0 [shape = 'u32[]', space=smem, size = 0x4, offset = 0x4, fixed_abs, tag = 'smem constant byte address 0x4 - core index']
  #allocation1 [shape = 'u32[144,128]{1,0:T(1,128)}', space=vmem, size = 0x12000, scoped, tag = 'internal scratch']
  %s0 = inlined_call_operand.vmem [shape: f32[8,32], index: 0, kind: input, shape index: {}]
  %s1 = inlined_call_operand.hbm [shape: bf16[32,128], index: 1, kind: input, shape index: {}]
  %s2 = inlined_call_operand.hbm [shape: bf16[3,128,128], index: 2, kind: input, shape index: {}]
  %s3 = inlined_call_operand.vmem [shape: f32[4,128], index: 3, kind: input, shape index: {}]
  %s4 = inlined_call_operand.vmem [shape: f32[8,128], index: 4, kind: output, shape index: {}]
  %s5 = sld [smem:[#allocation0]]
  $region34: #{policy_act_pallas.1} parent=0
    _
  %s7 = ssub.s32 1, %s5
  %s8 = scalar_select 0, %s7, %s5
  $region1: #{policy_act_pallas.1} parent=0
    #allocation2 [shape = 'u8[8192]{0}', space=vmem, size = 0x2000, scoped, tag = 'input window, operand 1, single buffered']
    #allocation3 [shape = 's32[1]{0}', space=sflag, size = 0x4, scoped, tag = 'scoped memory for policy_act_pallas.1']
    #allocation4 [shape = 'u8[98304]{0}', space=vmem, size = 0x18000, scoped, tag = 'input window, operand 2, single buffered']
    #allocation5 [shape = 's32[1]{0}', space=sflag, size = 0x4, scoped, tag = 'scoped memory for policy_act_pallas.1']
    %9 = vsyncpa [#allocation3], 0
    %10 = vsyncpa [#allocation5], 0
    // Predicated region
    $region2: #{policy_act_pallas.1} parent=1 // pred_check
      _
    $region3: #{policy_act_pallas.1} parent=1 // pred_check_branch
      %12 = sbr.rel (0) target = $region5
    $region4: #{policy_act_pallas.1} parent=1 // pred_region
      _
    $region5: #{policy_act_pallas.1} parent=1 // pred_fallthru
      _
    // Predicated region
    $region6: #{policy_act_pallas.1} parent=1 // pred_check
      _
    $region7: #{policy_act_pallas.1} parent=1 // pred_check_branch
      %14 = sbr.rel (0) target = $region9
    $region8: #{policy_act_pallas.1} parent=1 // pred_region
      %s16 = ssub.s32 256, 256
      %17 = vsyncadd [#allocation3], %s16
      %s18 = sshll.u32 [#allocation2], 4
      %s19 = int_to_ptr.vmem [resolvable:$true] %s18
      %24 = dma.hbm_to_vmem [thread:$0]  %s1, 256, %s19, [#allocation3], 64, 64, 4
    $region9: #{policy_act_pallas.1} parent=1 // pred_fallthru
      _
    // Predicated region
    $region10: #{policy_act_pallas.1} parent=1 // pred_check
      _
    $region11: #{policy_act_pallas.1} parent=1 // pred_check_branch
      %26 = sbr.rel (0) target = $region13
    $region12: #{policy_act_pallas.1} parent=1 // pred_region
      %s28 = ssub.s32 3072, 3072
      %29 = vsyncadd [#allocation5], %s28
      %s30 = sshll.u32 [#allocation4], 4
      %s31 = int_to_ptr.vmem [resolvable:$true] %s30
      %36 = dma.hbm_to_vmem [thread:$0]  %s2, 3072, %s31, [#allocation5], 64, 64, 4
    $region13: #{policy_act_pallas.1} parent=1 // pred_fallthru
      _
    // Predicated region
    $region14: #{policy_act_pallas.1} parent=1 // pred_check
      _
    $region15: #{policy_act_pallas.1} parent=1 // pred_check_branch
      %38 = sbr.rel (0) target = $region17
    $region16: #{policy_act_pallas.1} parent=1 // pred_region
      _
    $region17: #{policy_act_pallas.1} parent=1 // pred_fallthru
      _
    // Predicated region
    $region18: #{policy_act_pallas.1} parent=1 // pred_check
      _
    $region19: #{policy_act_pallas.1} parent=1 // pred_check_branch
      %40 = sbr.rel (0) target = $region21
    $region20: #{policy_act_pallas.1} parent=1 // pred_region
      %41 = dma.done [#allocation3], 256
    $region21: #{policy_act_pallas.1} parent=1 // pred_fallthru
      _
    // Predicated region
    $region22: #{policy_act_pallas.1} parent=1 // pred_check
      _
    $region23: #{policy_act_pallas.1} parent=1 // pred_check_branch
      %43 = sbr.rel (0) target = $region25
    $region24: #{policy_act_pallas.1} parent=1 // pred_region
      %44 = dma.done [#allocation5], 3072
    $region25: #{policy_act_pallas.1} parent=1 // pred_fallthru
      _
    %v46 = vld [vmem:[%s0] sm:$0xff]
    %v47 = vpack.c.bf16 %v46, %v46
    %v48 = vld [vmem:[#allocation2] sm:$0xf]
    %v49 = vld [vmem:[#allocation2 + $0x4] sm:$0xf]
    %v50 = vld [vmem:[#allocation2 + $0x8] sm:$0xf]
    %v51 = vld [vmem:[#allocation2 + $0xc] sm:$0xf]
    %v52 = vld [vmem:[%s3] sm:$0x1]
    %v53 = vlaneseq
    %v54 = vshrl.u32 %v53, 7
    %v55 = vsub.s32 0, %v54
    %v56 = vrot.slane %v52, %v55
    %v61 = vunpack.c.l.b16 %v48
    %v62 = vunpack.c.l.b16 %v49
    %v63 = vunpack.c.l.b16 %v50
    %v64 = vunpack.c.l.b16 %v51
    %v65 = vpack.c.b16 %v62, %v61
    %v66 = vpack.c.b16 %v64, %v63
    %vm69 = vcmask 261120
    %v71 = vsel %vm69, %v47, 0
    %73 = vmatprep.subr.bf16.mxu0 0
    %74 = vmatpush1.bf16.msra.mxu0 %v65
    %75 = vmatprep.subr.bf16.mxu0 0
    %76 = vmatpush1.bf16.msra.mxu0 %v66
    %77 = vmatprep.subr.bf16.mxu0 0
    %78 = vmatpush1.bf16.msra.mxu0 0
    %79 = vmatprep.subr.bf16.mxu0 0
    %80 = vmatpush1.bf16.msra.mxu0 0
    %81 = vmatprep.subr.bf16.mxu0 0
    %82 = vmatpush1.bf16.msra.mxu0 0
    %83 = vmatprep.subr.bf16.mxu0 0
    %84 = vmatpush1.bf16.msra.mxu0 0
    %85 = vmatprep.subr.bf16.mxu0 0
    %86 = vmatpush1.bf16.msra.mxu0 0
    %87 = vmatprep.subr.bf16.mxu0 0
    %88 = vmatpush1.bf16.msra.mxu0 0
    %89 = vmatprep.subr.bf16.mxu0 0
    %90 = vmatpush1.bf16.msra.mxu0 0
    %91 = vmatprep.subr.bf16.mxu0 0
    %92 = vmatpush1.bf16.msra.mxu0 0
    %93 = vmatprep.subr.bf16.mxu0 0
    %94 = vmatpush1.bf16.msra.mxu0 0
    %95 = vmatprep.subr.bf16.mxu0 0
    %96 = vmatpush1.bf16.msra.mxu0 0
    %97 = vmatprep.subr.bf16.mxu0 0
    %98 = vmatpush1.bf16.msra.mxu0 0
    %99 = vmatprep.subr.bf16.mxu0 0
    %100 = vmatpush1.bf16.msra.mxu0 0
    %101 = vmatprep.subr.bf16.mxu0 0
    %102 = vmatpush1.bf16.msra.mxu0 0
    %103 = vmatprep.subr.bf16.mxu0 0
    %104 = vmatpush1.bf16.msra.mxu0 0
    %105 = vmatprep.mubr.bf16.mxu0 0
    %106 = vmatmul.mubr.bf16.gmra.mrb[0].mxu0 %v71
    %v107 = vpop.f32.mrb[0].mxu0
    %v108 = vadd.f32 %v56, %v107
    %v109 = vpop.f32.mrb[0].mxu0
    %v110 = vpop.f32.mrb[0].mxu0
    %v111 = vpop.f32.mrb[0].mxu0
    %112 = vdwg.mxu0
    %v113 = vtanh.pop %v108
    %v114 = vpack.c.bf16 %v113, %v113
    %v115 = vld [vmem:[#allocation4] sm:$0xf]
    %v116 = vld [vmem:[#allocation4 + $0x4] sm:$0xf]
    %v117 = vld [vmem:[#allocation4 + $0x8] sm:$0xf]
    %v118 = vld [vmem:[#allocation4 + $0xc] sm:$0xf]
    %v119 = vld [vmem:[#allocation4 + $0x10] sm:$0xf]
    %v120 = vld [vmem:[#allocation4 + $0x14] sm:$0xf]
    %v121 = vld [vmem:[#allocation4 + $0x18] sm:$0xf]
    %v122 = vld [vmem:[#allocation4 + $0x1c] sm:$0xf]
    %v123 = vld [vmem:[#allocation4 + $0x20] sm:$0xf]
    %v124 = vld [vmem:[#allocation4 + $0x24] sm:$0xf]
    %v125 = vld [vmem:[#allocation4 + $0x28] sm:$0xf]
    %v126 = vld [vmem:[#allocation4 + $0x2c] sm:$0xf]
    %v127 = vld [vmem:[#allocation4 + $0x30] sm:$0xf]
    %v128 = vld [vmem:[#allocation4 + $0x34] sm:$0xf]
    %v129 = vld [vmem:[#allocation4 + $0x38] sm:$0xf]
    %v130 = vld [vmem:[#allocation4 + $0x3c] sm:$0xf]
    %v131 = vld [vmem:[%s3 + $0x1] sm:$0x1]
    %v132 = vlaneseq
    %v133 = vshrl.u32 %v132, 7
    %v134 = vsub.s32 0, %v133
    %v135 = vrot.slane %v131, %v134
    %v152 = vunpack.c.l.b16 %v115
    %v153 = vunpack.c.l.b16 %v116
    %v154 = vunpack.c.l.b16 %v117
    %v155 = vunpack.c.l.b16 %v118
    %v156 = vunpack.c.l.b16 %v119
    %v157 = vunpack.c.l.b16 %v120
    %v158 = vunpack.c.l.b16 %v121
    %v159 = vunpack.c.l.b16 %v122
    %v160 = vunpack.c.l.b16 %v123
    %v161 = vunpack.c.l.b16 %v124
    %v162 = vunpack.c.l.b16 %v125
    %v163 = vunpack.c.l.b16 %v126
    %v164 = vunpack.c.l.b16 %v127
    %v165 = vunpack.c.l.b16 %v128
    %v166 = vunpack.c.l.b16 %v129
    %v167 = vunpack.c.l.b16 %v130
    %v168 = vpack.c.b16 %v153, %v152
    %v169 = vpack.c.b16 %v155, %v154
    %v170 = vpack.c.b16 %v157, %v156
    %v171 = vpack.c.b16 %v159, %v158
    %v172 = vpack.c.b16 %v161, %v160
    %v173 = vpack.c.b16 %v163, %v162
    %v174 = vpack.c.b16 %v165, %v164
    %v175 = vpack.c.b16 %v167, %v166
    %184 = vmatprep.subr.bf16.mxu0 0
    %185 = vmatpush1.bf16.msra.mxu0 %v168
    %186 = vmatprep.subr.bf16.mxu0 0
    %187 = vmatpush1.bf16.msra.mxu0 %v169
    %188 = vmatprep.subr.bf16.mxu0 0
    %189 = vmatpush1.bf16.msra.mxu0 %v170
    %190 = vmatprep.subr.bf16.mxu0 0
    %191 = vmatpush1.bf16.msra.mxu0 %v171
    %192 = vmatprep.subr.bf16.mxu0 0
    %193 = vmatpush1.bf16.msra.mxu0 %v172
    %194 = vmatprep.subr.bf16.mxu0 0
    %195 = vmatpush1.bf16.msra.mxu0 %v173
    %196 = vmatprep.subr.bf16.mxu0 0
    %197 = vmatpush1.bf16.msra.mxu0 %v174
    %198 = vmatprep.subr.bf16.mxu0 0
    %199 = vmatpush1.bf16.msra.mxu0 %v175
    %200 = vmatprep.subr.bf16.mxu0 0
    %201 = vmatpush1.bf16.msra.mxu0 0
    %202 = vmatprep.subr.bf16.mxu0 0
    %203 = vmatpush1.bf16.msra.mxu0 0
    %204 = vmatprep.subr.bf16.mxu0 0
    %205 = vmatpush1.bf16.msra.mxu0 0
    %206 = vmatprep.subr.bf16.mxu0 0
    %207 = vmatpush1.bf16.msra.mxu0 0
    %208 = vmatprep.subr.bf16.mxu0 0
    %209 = vmatpush1.bf16.msra.mxu0 0
    %210 = vmatprep.subr.bf16.mxu0 0
    %211 = vmatpush1.bf16.msra.mxu0 0
    %212 = vmatprep.subr.bf16.mxu0 0
    %213 = vmatpush1.bf16.msra.mxu0 0
    %214 = vmatprep.subr.bf16.mxu0 0
    %215 = vmatpush1.bf16.msra.mxu0 0
    %216 = vmatprep.mubr.bf16.mxu0 0
    %217 = vmatmul.mubr.bf16.gmra.mrb[0].mxu0 %v114
    %v218 = vpop.f32.mrb[0].mxu0
    %v219 = vadd.f32 %v135, %v218
    %v220 = vpop.f32.mrb[0].mxu0
    %v221 = vpop.f32.mrb[0].mxu0
    %v222 = vpop.f32.mrb[0].mxu0
    %223 = vdwg.mxu0
    %v224 = vtanh.pop %v219
    %v225 = vpack.c.bf16 %v224, %v224
    %s226 = scalar_lea.vmem [#allocation4], 64
    %v227 = vld [vmem:[%s226] sm:$0xf]
    %v228 = vld [vmem:[%s226 + $0x4] sm:$0xf]
    %v229 = vld [vmem:[%s226 + $0x8] sm:$0xf]
    %v230 = vld [vmem:[%s226 + $0xc] sm:$0xf]
    %v231 = vld [vmem:[%s226 + $0x10] sm:$0xf]
    %v232 = vld [vmem:[%s226 + $0x14] sm:$0xf]
    %v233 = vld [vmem:[%s226 + $0x18] sm:$0xf]
    %v234 = vld [vmem:[%s226 + $0x1c] sm:$0xf]
    %v235 = vld [vmem:[%s226 + $0x20] sm:$0xf]
    %v236 = vld [vmem:[%s226 + $0x24] sm:$0xf]
    %v237 = vld [vmem:[%s226 + $0x28] sm:$0xf]
    %v238 = vld [vmem:[%s226 + $0x2c] sm:$0xf]
    %v239 = vld [vmem:[%s226 + $0x30] sm:$0xf]
    %v240 = vld [vmem:[%s226 + $0x34] sm:$0xf]
    %v241 = vld [vmem:[%s226 + $0x38] sm:$0xf]
    %v242 = vld [vmem:[%s226 + $0x3c] sm:$0xf]
    %v243 = vld [vmem:[%s3 + $0x2] sm:$0x1]
    %v244 = vlaneseq
    %v245 = vshrl.u32 %v244, 7
    %v246 = vsub.s32 0, %v245
    %v247 = vrot.slane %v243, %v246
    %v264 = vunpack.c.l.b16 %v227
    %v265 = vunpack.c.l.b16 %v228
    %v266 = vunpack.c.l.b16 %v229
    %v267 = vunpack.c.l.b16 %v230
    %v268 = vunpack.c.l.b16 %v231
    %v269 = vunpack.c.l.b16 %v232
    %v270 = vunpack.c.l.b16 %v233
    %v271 = vunpack.c.l.b16 %v234
    %v272 = vunpack.c.l.b16 %v235
    %v273 = vunpack.c.l.b16 %v236
    %v274 = vunpack.c.l.b16 %v237
    %v275 = vunpack.c.l.b16 %v238
    %v276 = vunpack.c.l.b16 %v239
    %v277 = vunpack.c.l.b16 %v240
    %v278 = vunpack.c.l.b16 %v241
    %v279 = vunpack.c.l.b16 %v242
    %v280 = vpack.c.b16 %v265, %v264
    %v281 = vpack.c.b16 %v267, %v266
    %v282 = vpack.c.b16 %v269, %v268
    %v283 = vpack.c.b16 %v271, %v270
    %v284 = vpack.c.b16 %v273, %v272
    %v285 = vpack.c.b16 %v275, %v274
    %v286 = vpack.c.b16 %v277, %v276
    %v287 = vpack.c.b16 %v279, %v278
    %296 = vmatprep.subr.bf16.mxu0 0
    %297 = vmatpush1.bf16.msra.mxu0 %v280
    %298 = vmatprep.subr.bf16.mxu0 0
    %299 = vmatpush1.bf16.msra.mxu0 %v281
    %300 = vmatprep.subr.bf16.mxu0 0
    %301 = vmatpush1.bf16.msra.mxu0 %v282
    %302 = vmatprep.subr.bf16.mxu0 0
    %303 = vmatpush1.bf16.msra.mxu0 %v283
    %304 = vmatprep.subr.bf16.mxu0 0
    %305 = vmatpush1.bf16.msra.mxu0 %v284
    %306 = vmatprep.subr.bf16.mxu0 0
    %307 = vmatpush1.bf16.msra.mxu0 %v285
    %308 = vmatprep.subr.bf16.mxu0 0
    %309 = vmatpush1.bf16.msra.mxu0 %v286
    %310 = vmatprep.subr.bf16.mxu0 0
    %311 = vmatpush1.bf16.msra.mxu0 %v287
    %312 = vmatprep.subr.bf16.mxu0 0
    %313 = vmatpush1.bf16.msra.mxu0 0
    %314 = vmatprep.subr.bf16.mxu0 0
    %315 = vmatpush1.bf16.msra.mxu0 0
    %316 = vmatprep.subr.bf16.mxu0 0
    %317 = vmatpush1.bf16.msra.mxu0 0
    %318 = vmatprep.subr.bf16.mxu0 0
    %319 = vmatpush1.bf16.msra.mxu0 0
    %320 = vmatprep.subr.bf16.mxu0 0
    %321 = vmatpush1.bf16.msra.mxu0 0
    %322 = vmatprep.subr.bf16.mxu0 0
    %323 = vmatpush1.bf16.msra.mxu0 0
    %324 = vmatprep.subr.bf16.mxu0 0
    %325 = vmatpush1.bf16.msra.mxu0 0
    %326 = vmatprep.subr.bf16.mxu0 0
    %327 = vmatpush1.bf16.msra.mxu0 0
    %328 = vmatprep.mubr.bf16.mxu0 0
    %329 = vmatmul.mubr.bf16.gmra.mrb[0].mxu0 %v225
    %v330 = vpop.f32.mrb[0].mxu0
    %v331 = vadd.f32 %v247, %v330
    %v332 = vpop.f32.mrb[0].mxu0
    %v333 = vpop.f32.mrb[0].mxu0
    %v334 = vpop.f32.mrb[0].mxu0
    %335 = vdwg.mxu0
    %v336 = vtanh.pop %v331
    %v337 = vpack.c.bf16 %v336, %v336
    %s338 = scalar_lea.vmem [#allocation4], 128
    %v339 = vld [vmem:[%s338] sm:$0xf]
    %v340 = vld [vmem:[%s338 + $0x4] sm:$0xf]
    %v341 = vld [vmem:[%s338 + $0x8] sm:$0xf]
    %v342 = vld [vmem:[%s338 + $0xc] sm:$0xf]
    %v343 = vld [vmem:[%s338 + $0x10] sm:$0xf]
    %v344 = vld [vmem:[%s338 + $0x14] sm:$0xf]
    %v345 = vld [vmem:[%s338 + $0x18] sm:$0xf]
    %v346 = vld [vmem:[%s338 + $0x1c] sm:$0xf]
    %v347 = vld [vmem:[%s338 + $0x20] sm:$0xf]
    %v348 = vld [vmem:[%s338 + $0x24] sm:$0xf]
    %v349 = vld [vmem:[%s338 + $0x28] sm:$0xf]
    %v350 = vld [vmem:[%s338 + $0x2c] sm:$0xf]
    %v351 = vld [vmem:[%s338 + $0x30] sm:$0xf]
    %v352 = vld [vmem:[%s338 + $0x34] sm:$0xf]
    %v353 = vld [vmem:[%s338 + $0x38] sm:$0xf]
    %v354 = vld [vmem:[%s338 + $0x3c] sm:$0xf]
    %v355 = vld [vmem:[%s3 + $0x3] sm:$0x1]
    %v356 = vlaneseq
    %v357 = vshrl.u32 %v356, 7
    %v358 = vsub.s32 0, %v357
    %v359 = vrot.slane %v355, %v358
    %v376 = vunpack.c.l.b16 %v339
    %v377 = vunpack.c.l.b16 %v340
    %v378 = vunpack.c.l.b16 %v341
    %v379 = vunpack.c.l.b16 %v342
    %v380 = vunpack.c.l.b16 %v343
    %v381 = vunpack.c.l.b16 %v344
    %v382 = vunpack.c.l.b16 %v345
    %v383 = vunpack.c.l.b16 %v346
    %v384 = vunpack.c.l.b16 %v347
    %v385 = vunpack.c.l.b16 %v348
    %v386 = vunpack.c.l.b16 %v349
    %v387 = vunpack.c.l.b16 %v350
    %v388 = vunpack.c.l.b16 %v351
    %v389 = vunpack.c.l.b16 %v352
    %v390 = vunpack.c.l.b16 %v353
    %v391 = vunpack.c.l.b16 %v354
    %v392 = vpack.c.b16 %v377, %v376
    %v393 = vpack.c.b16 %v379, %v378
    %v394 = vpack.c.b16 %v381, %v380
    %v395 = vpack.c.b16 %v383, %v382
    %v396 = vpack.c.b16 %v385, %v384
    %v397 = vpack.c.b16 %v387, %v386
    %v398 = vpack.c.b16 %v389, %v388
    %v399 = vpack.c.b16 %v391, %v390
    %408 = vmatprep.subr.bf16.mxu0 0
    %409 = vmatpush1.bf16.msra.mxu0 %v392
    %410 = vmatprep.subr.bf16.mxu0 0
    %411 = vmatpush1.bf16.msra.mxu0 %v393
    %412 = vmatprep.subr.bf16.mxu0 0
    %413 = vmatpush1.bf16.msra.mxu0 %v394
    %414 = vmatprep.subr.bf16.mxu0 0
    %415 = vmatpush1.bf16.msra.mxu0 %v395
    %416 = vmatprep.subr.bf16.mxu0 0
    %417 = vmatpush1.bf16.msra.mxu0 %v396
    %418 = vmatprep.subr.bf16.mxu0 0
    %419 = vmatpush1.bf16.msra.mxu0 %v397
    %420 = vmatprep.subr.bf16.mxu0 0
    %421 = vmatpush1.bf16.msra.mxu0 %v398
    %422 = vmatprep.subr.bf16.mxu0 0
    %423 = vmatpush1.bf16.msra.mxu0 %v399
    %424 = vmatprep.subr.bf16.mxu0 0
    %425 = vmatpush1.bf16.msra.mxu0 0
    %426 = vmatprep.subr.bf16.mxu0 0
    %427 = vmatpush1.bf16.msra.mxu0 0
    %428 = vmatprep.subr.bf16.mxu0 0
    %429 = vmatpush1.bf16.msra.mxu0 0
    %430 = vmatprep.subr.bf16.mxu0 0
    %431 = vmatpush1.bf16.msra.mxu0 0
    %432 = vmatprep.subr.bf16.mxu0 0
    %433 = vmatpush1.bf16.msra.mxu0 0
    %434 = vmatprep.subr.bf16.mxu0 0
    %435 = vmatpush1.bf16.msra.mxu0 0
    %436 = vmatprep.subr.bf16.mxu0 0
    %437 = vmatpush1.bf16.msra.mxu0 0
    %438 = vmatprep.subr.bf16.mxu0 0
    %439 = vmatpush1.bf16.msra.mxu0 0
    %440 = vmatprep.mubr.bf16.mxu0 0
    %441 = vmatmul.mubr.bf16.gmra.mrb[0].mxu0 %v337
    %v442 = vpop.f32.mrb[0].mxu0
    %v443 = vadd.f32 %v359, %v442
    %v444 = vpop.f32.mrb[0].mxu0
    %v445 = vpop.f32.mrb[0].mxu0
    %v446 = vpop.f32.mrb[0].mxu0
    %447 = vdwg.mxu0
    %448 = vst [vmem:[%s4] sm:$0xff] %v443
    // Predicated region
    $region26: #{policy_act_pallas.1} parent=1 // pred_check
      _
    $region27: #{policy_act_pallas.1} parent=1 // pred_check_branch
      %450 = sbr.rel (0) target = $region29
    $region28: #{policy_act_pallas.1} parent=1 // pred_region
      _
    $region29: #{policy_act_pallas.1} parent=1 // pred_fallthru
      _
    // Predicated region
    $region30: #{policy_act_pallas.1} parent=1 // pred_check
      _
    $region31: #{policy_act_pallas.1} parent=1 // pred_check_branch
      %452 = sbr.rel (0) target = $region33
    $region32: #{policy_act_pallas.1} parent=1 // pred_region
      _
    $region33: #{policy_act_pallas.1} parent=1 // pred_fallthru
      _
    %453 = vsyncpa [#allocation3], 1
    %454 = vsyncpa [#allocation5], 1

</llo_original>
